<compile_context>
chip_gen: v7x
topology: tpu7x:2x2x1
jax: 0.10.0
libtpu: 0.0.40
codegen_flags: <defaults>
</compile_context>

<pallas_src>
import functools
import math

import jax
import jax.numpy as jnp
from jax.experimental import pallas as pl
from jax.experimental.pallas import tpu as pltpu


def _time_embedding_kernel(t_ref, freqs_ref, w1_ref, b1_ref, w2_ref, b2_ref,
                           o_ref, *, fuse_sincos):
    ch = freqs_ref.shape[1]                 # sin_channels = C // 8 (static)

    t = t_ref[...]                          # (TB, 1) f32
    arg = t * freqs_ref[...]                # (TB, ch) f32

    # Sinusoids in f32 (EUP work is free filler); cast to the MXU input dtype
    # right before the dot.
    in_dt = w1_ref.dtype
    if fuse_sincos:
        # ch % 128 == 0: lane-aligned concat -> one K = C//4 dot (halves the
        # layer-1 MXU K-passes at large C).
        emb = jnp.concatenate([jnp.sin(arg), jnp.cos(arg)], axis=1).astype(in_dt)
        h = jnp.dot(emb, w1_ref[...], preferred_element_type=jnp.float32)
    else:
        # Small ch: splitting over the two static row-slices of w1 avoids a
        # cross-lane relayout for the concat.
        h = (jnp.dot(jnp.sin(arg).astype(in_dt), w1_ref[:ch, :],
                     preferred_element_type=jnp.float32)
             + jnp.dot(jnp.cos(arg).astype(in_dt), w1_ref[ch:, :],
                       preferred_element_type=jnp.float32))

    h = h + b1_ref[...]                     # (TB, C) f32
    h = h * jax.nn.sigmoid(h)               # Swish, kept in f32 (v5e: no bf16 EUP)

    out = jnp.dot(h.astype(w2_ref.dtype), w2_ref[...],
                  preferred_element_type=jnp.float32) + b2_ref[...]

    o_ref[...] = out.astype(o_ref.dtype)


def _round_up(x, m):
    return ((x + m - 1) // m) * m


def time_embedding(t, w1, b1, w2, b2, *, block_b=None, out_dtype=jnp.float32):
    """t: (B,) float32. Returns (B, C) `out_dtype`, matching the PyTorch forward."""
    B = t.shape[0]
    C = w1.shape[1]
    ch = C // 8
    assert C % 128 == 0, (
        "channels must be a multiple of 128 so the sin/cos row-slices of w1 "
        "stay bf16-tile aligned and output stores are lane-dense")
    assert w1.shape == (C // 4, C) and w2.shape == (C, C)

    t2d = t.reshape(B, 1).astype(jnp.float32)

    # Hoisted frequency table (host-side constant math, tiny resident input).
    scale = math.log(10000.0) / max(ch - 1, 1)
    freqs = jnp.exp(jnp.arange(ch, dtype=jnp.float32) * -scale).reshape(1, ch)

    # bf16 weights (sinusoid inputs in [-1, 1] are numerically benign); f32
    # accumulation inside the kernel.  Biases stay f32.
    w1_bf = w1.astype(jnp.bfloat16)
    w2_bf = w2.astype(jnp.bfloat16)
    b1_2d = b1.reshape(1, C).astype(jnp.float32)
    b2_2d = b2.reshape(1, C).astype(jnp.float32)

    # Batch tile: multiple of 16 so bf16 MXU LHS pushes are fully packed.
    if block_b is not None:
        tb = max(16, _round_up(min(block_b, B), 16))
    elif B <= 64:
        tb = _round_up(B, 16)                       # single grid step
    else:
        tb = min(_round_up(pl.cdiv(B, 2), 16), 512)  # ~2 fat blocks, cap at 512
    grid = (pl.cdiv(B, tb),)

    # Gate megacore sharding: a 1-step grid (or tiny batch) must not be
    # "parallel" -- on v7x each TC would DMA its own full weight copy for
    # nothing.  Large batches get "parallel" so both TCs work.
    semantics = ("arbitrary",) if grid[0] == 1 else ("parallel",)

    out_itemsize = jnp.dtype(out_dtype).itemsize

    # VMEM budget: single-buffered resident weights + double-buffered t/out
    # blocks + f32 intermediates.  Capped at 48 MiB (under v7x's 64 MiB).
    # NOTE: for C >~ 4096 w2 alone is >= 32 MiB; tile w2 over the output-N
    # dimension with a second grid axis before growing C that far.
    weight_bytes = (w1_bf.size * 2 + w2_bf.size * 2
                    + (b1_2d.size + b2_2d.size + freqs.size) * 4)
    act_bytes = 2 * (tb * 1 * 4 + tb * C * out_itemsize)
    scratch_bytes = 6 * tb * C * 4
    vmem_limit = int(min(max(2 * (weight_bytes + act_bytes + scratch_bytes),
                             16 << 20), 48 << 20))

    cost = pl.CostEstimate(
        flops=2 * B * (C // 4 * C + C * C),
        transcendentals=B * (2 * ch + C),
        bytes_accessed=(w1_bf.size + w2_bf.size) * 2
        + (b1_2d.size + b2_2d.size + freqs.size) * 4
        + t2d.size * 4 + B * C * out_itemsize,
    )

    kernel = functools.partial(_time_embedding_kernel,
                               fuse_sincos=(ch % 128 == 0))

    resident = dict(pipeline_mode=pl.Buffered(1))   # constant-index inputs

    return pl.pallas_call(
        kernel,
        out_shape=jax.ShapeDtypeStruct((B, C), out_dtype),
        grid=grid,
        in_specs=[
            pl.BlockSpec((tb, 1), lambda i: (i, 0)),                    # t (pipelined)
            pl.BlockSpec((1, ch), lambda i: (0, 0), **resident),        # freqs
            pl.BlockSpec((C // 4, C), lambda i: (0, 0), **resident),    # w1
            pl.BlockSpec((1, C), lambda i: (0, 0), **resident),         # b1
            pl.BlockSpec((C, C), lambda i: (0, 0), **resident),         # w2
            pl.BlockSpec((1, C), lambda i: (0, 0), **resident),         # b2
        ],
        out_specs=pl.BlockSpec((tb, C), lambda i: (i, 0)),
        compiler_params=pltpu.CompilerParams(
            dimension_semantics=semantics,
            vmem_limit_bytes=vmem_limit,
        ),
        cost_estimate=cost,
    )(t2d, freqs, w1_bf, b1_2d, w2_bf, b2_2d)


def reference(t, w1, b1, w2, b2):
    """Pure-JAX f32 reference mirroring the PyTorch forward."""
    C = w1.shape[1]
    ch = C // 8
    emb = math.log(10000.0) / max(ch - 1, 1)
    emb = jnp.arange(ch, dtype=jnp.float32) * -emb
    emb = t[:, None] * jnp.exp(emb)[None, :]
    emb = jnp.concatenate([jnp.sin(emb), jnp.cos(emb)], axis=1)
    h = emb @ w1 + b1
    h = h * jax.nn.sigmoid(h)
    return h @ w2 + b2


if __name__ == "__main__":
    # C=128 keeps the test small while giving a lane-dense (multiple-of-128)
    # output so stores are unmasked; B=16 fills exactly one bf16-packed tile.
    channels = 128
    batch = 16

    key = jax.random.PRNGKey(0)
    k_t, k_w1, k_b1, k_w2, k_b2 = jax.random.split(key, 5)

    t = jax.random.uniform(k_t, (batch,), dtype=jnp.float32) * 1000.0

    in1 = channels // 4
    w1 = jax.random.normal(k_w1, (in1, channels), dtype=jnp.float32) / math.sqrt(in1)
    b1 = jax.random.normal(k_b1, (channels,), dtype=jnp.float32) * 0.01
    w2 = jax.random.normal(k_w2, (channels, channels), dtype=jnp.float32) / math.sqrt(channels)
    b2 = jax.random.normal(k_b2, (channels,), dtype=jnp.float32) * 0.01

    out = time_embedding(t, w1, b1, w2, b2)
    jax.block_until_ready(out)

    ref = reference(t, w1, b1, w2, b2)
    assert out.shape == (batch, channels)
    # Looser tolerance vs the f32 reference because weights/MXU inputs are bf16
    # (accumulation is f32).
    assert jnp.allclose(out, ref, atol=5e-2, rtol=5e-2), "mismatch vs reference"

    print("KERNEL_OK")
</pallas_src>

<mosaic_0001>
module attributes {stable_mosaic.version = 11 : i64} {
  func.func @_time_embedding_kernel(%arg0: i32, %arg1: memref<16x1xf32, #tpu.memory_space<vmem>>, %arg2: memref<1x16xf32, #tpu.memory_space<vmem>>, %arg3: memref<32x128xbf16, #tpu.memory_space<vmem>>, %arg4: memref<1x128xf32, #tpu.memory_space<vmem>>, %arg5: memref<128x128xbf16, #tpu.memory_space<vmem>>, %arg6: memref<1x128xf32, #tpu.memory_space<vmem>>, %arg7: memref<16x128xf32, #tpu.memory_space<vmem>>) attributes {dimension_semantics = [#tpu.dimension_semantics<arbitrary>], iteration_bounds = array<i64: 1>, scalar_prefetch = 0 : i64, scratch_operands = 0 : i64, tpu.core_type = #tpu.core_type<tc>, window_params = [{transform_indices = @transform_0, window_bounds = array<i64: 16, 1>}, {pipeline_mode = #tpu.pipeline_mode<synchronous>, transform_indices = @transform_1, window_bounds = array<i64: 1, 16>}, {pipeline_mode = #tpu.pipeline_mode<synchronous>, transform_indices = @transform_2, window_bounds = array<i64: 32, 128>}, {pipeline_mode = #tpu.pipeline_mode<synchronous>, transform_indices = @transform_3, window_bounds = array<i64: 1, 128>}, {pipeline_mode = #tpu.pipeline_mode<synchronous>, transform_indices = @transform_4, window_bounds = array<i64: 128, 128>}, {pipeline_mode = #tpu.pipeline_mode<synchronous>, transform_indices = @transform_5, window_bounds = array<i64: 1, 128>}, {transform_indices = @transform_6, window_bounds = array<i64: 16, 128>}]} {
    %c0 = arith.constant 0 : index
    %c0_0 = arith.constant 0 : index
    %0 = vector.load %arg1[%c0, %c0_0] : memref<16x1xf32, #tpu.memory_space<vmem>>, vector<16x1xf32>
    %c0_1 = arith.constant 0 : index
    %c0_2 = arith.constant 0 : index
    %1 = vector.load %arg2[%c0_1, %c0_2] : memref<1x16xf32, #tpu.memory_space<vmem>>, vector<1x16xf32>
    %2 = vector.broadcast %0 : vector<16x1xf32> to vector<16x16xf32>
    %3 = vector.broadcast %1 : vector<1x16xf32> to vector<16x16xf32>
    %4 = arith.mulf %2, %3 : vector<16x16xf32>
    %5 = math.sin %4 : vector<16x16xf32>
    %6 = arith.truncf %5 : vector<16x16xf32> to vector<16x16xbf16>
    %c0_3 = arith.constant 0 : index
    %c0_4 = arith.constant 0 : index
    %7 = vector.load %arg3[%c0_3, %c0_4] : memref<32x128xbf16, #tpu.memory_space<vmem>>, vector<16x128xbf16>
    %cst = arith.constant dense<0.000000e+00> : vector<16x128xf32>
    %8 = tpu.matmul %6, %7, %cst {dimension_numbers = #tpu.dot_dimension_numbers<[1], [0], [0], [1], [0, 0, 1, 1], [], []>} : vector<16x16xbf16>, vector<16x128xbf16>, vector<16x128xf32> -> vector<16x128xf32>
    %9 = math.cos %4 : vector<16x16xf32>
    %10 = arith.truncf %9 : vector<16x16xf32> to vector<16x16xbf16>
    %c16 = arith.constant 16 : index
    %c0_5 = arith.constant 0 : index
    %11 = vector.load %arg3[%c16, %c0_5] : memref<32x128xbf16, #tpu.memory_space<vmem>>, vector<16x128xbf16>
    %cst_6 = arith.constant dense<0.000000e+00> : vector<16x128xf32>
    %12 = tpu.matmul %10, %11, %cst_6 {dimension_numbers = #tpu.dot_dimension_numbers<[1], [0], [0], [1], [0, 0, 1, 1], [], []>} : vector<16x16xbf16>, vector<16x128xbf16>, vector<16x128xf32> -> vector<16x128xf32>
    %13 = arith.addf %8, %12 : vector<16x128xf32>
    %c0_7 = arith.constant 0 : index
    %c0_8 = arith.constant 0 : index
    %14 = vector.load %arg4[%c0_7, %c0_8] : memref<1x128xf32, #tpu.memory_space<vmem>>, vector<1x128xf32>
    %15 = vector.broadcast %14 : vector<1x128xf32> to vector<16x128xf32>
    %16 = arith.addf %13, %15 : vector<16x128xf32>
    %17 = arith.negf %16 : vector<16x128xf32>
    %18 = math.exp %17 : vector<16x128xf32>
    %cst_9 = arith.constant 1.000000e+00 : f32
    %19 = vector.broadcast %cst_9 : f32 to vector<16x128xf32>
    %20 = arith.addf %19, %18 : vector<16x128xf32>
    %21 = arith.divf %19, %20 : vector<16x128xf32>
    %22 = arith.mulf %16, %21 : vector<16x128xf32>
    %23 = arith.truncf %22 : vector<16x128xf32> to vector<16x128xbf16>
    %c0_10 = arith.constant 0 : index
    %c0_11 = arith.constant 0 : index
    %24 = vector.load %arg5[%c0_10, %c0_11] : memref<128x128xbf16, #tpu.memory_space<vmem>>, vector<128x128xbf16>
    %cst_12 = arith.constant dense<0.000000e+00> : vector<16x128xf32>
    %25 = tpu.matmul %23, %24, %cst_12 {dimension_numbers = #tpu.dot_dimension_numbers<[1], [0], [0], [1], [0, 0, 1, 1], [], []>} : vector<16x128xbf16>, vector<128x128xbf16>, vector<16x128xf32> -> vector<16x128xf32>
    %c0_13 = arith.constant 0 : index
    %c0_14 = arith.constant 0 : index
    %26 = vector.load %arg6[%c0_13, %c0_14] : memref<1x128xf32, #tpu.memory_space<vmem>>, vector<1x128xf32>
    %27 = vector.broadcast %26 : vector<1x128xf32> to vector<16x128xf32>
    %28 = arith.addf %25, %27 : vector<16x128xf32>
    %c0_15 = arith.constant 0 : index
    %c0_16 = arith.constant 0 : index
    %29 = vector.load %arg7[%c0_15, %c0_16] : memref<16x128xf32, #tpu.memory_space<vmem>>, vector<16x128xf32>
    tpu.vector_store %arg7[%c0_15, %c0_16], %28 {strides = array<i32>} : memref<16x128xf32, #tpu.memory_space<vmem>>, vector<16x128xf32>,
    return
  }
  func.func @transform_0(%arg0: i32) -> (i32, i32) {
    %c0_i32 = arith.constant 0 : i32
    %c0_i32_0 = arith.constant 0 : i32
    return %arg0, %c0_i32 : i32, i32
  }
  func.func @transform_1(%arg0: i32) -> (i32, i32) {
    %c0_i32 = arith.constant 0 : i32
    %c0_i32_0 = arith.constant 0 : i32
    %c0_i32_1 = arith.constant 0 : i32
    return %c0_i32, %c0_i32_0 : i32, i32
  }
  func.func @transform_2(%arg0: i32) -> (i32, i32) {
    %c0_i32 = arith.constant 0 : i32
    %c0_i32_0 = arith.constant 0 : i32
    %c0_i32_1 = arith.constant 0 : i32
    return %c0_i32, %c0_i32_0 : i32, i32
  }
  func.func @transform_3(%arg0: i32) -> (i32, i32) {
    %c0_i32 = arith.constant 0 : i32
    %c0_i32_0 = arith.constant 0 : i32
    %c0_i32_1 = arith.constant 0 : i32
    return %c0_i32, %c0_i32_0 : i32, i32
  }
  func.func @transform_4(%arg0: i32) -> (i32, i32) {
    %c0_i32 = arith.constant 0 : i32
    %c0_i32_0 = arith.constant 0 : i32
    %c0_i32_1 = arith.constant 0 : i32
    return %c0_i32, %c0_i32_0 : i32, i32
  }
  func.func @transform_5(%arg0: i32) -> (i32, i32) {
    %c0_i32 = arith.constant 0 : i32
    %c0_i32_0 = arith.constant 0 : i32
    %c0_i32_1 = arith.constant 0 : i32
    return %c0_i32, %c0_i32_0 : i32, i32
  }
  func.func @transform_6(%arg0: i32) -> (i32, i32) {
    %c0_i32 = arith.constant 0 : i32
    %c0_i32_0 = arith.constant 0 : i32
    return %arg0, %c0_i32 : i32, i32
  }
}

</mosaic_0001>

<llo_original>
// kernel: tpu_custom_call.1
$region0: #{tpu_custom_call.1}
  #allocation0 [shape = 'u32[]', space=smem, size = 0x4, offset = 0x4, fixed_abs, tag = 'smem constant byte address 0x4 - core index']
  #allocation1 [shape = 'u32[144,128]{1,0:T(1,128)}', space=vmem, size = 0x12000, scoped, tag = 'internal scratch']
  %s0 = inlined_call_operand.vmem [shape: f32[16,1], index: 0, kind: input, shape index: {}]
  %s1 = inlined_call_operand.vmem [shape: f32[1,16], index: 1, kind: input, shape index: {}]
  %s2 = inlined_call_operand.vmem [shape: bf16[32,128], index: 2, kind: input, shape index: {}]
  %s3 = inlined_call_operand.vmem [shape: f32[1,128], index: 3, kind: input, shape index: {}]
  %s4 = inlined_call_operand.hbm [shape: bf16[128,128], index: 4, kind: input, shape index: {}]
  %s5 = inlined_call_operand.vmem [shape: f32[1,128], index: 5, kind: input, shape index: {}]
  %s6 = inlined_call_operand.hbm [shape: f32[16,128], index: 6, kind: output, shape index: {}]
  %s7 = sld [smem:[#allocation0]]
  $region38: #{tpu_custom_call.1} parent=0
    _
  %s9 = ssub.s32 1, %s7
  %s10 = scalar_select 0, %s9, %s7
  $region1: #{tpu_custom_call.1} parent=0
    #allocation2 [shape = 'u8[32768]{0}', space=vmem, size = 0x8000, scoped, tag = 'input window, operand 4, single buffered']
    #allocation3 [shape = 's32[1]{0}', space=sflag, size = 0x4, scoped, tag = 'scoped memory for tpu_custom_call.1']
    #allocation4 [shape = 's32[1]{0}', space=sflag, size = 0x4, scoped, tag = 'scoped memory for tpu_custom_call.1']
    #allocation5 [shape = 'u8[8192]{0}', space=vmem, size = 0x2000, scoped, tag = 'output window, operand 0, single buffered']
    %11 = vsyncpa [#allocation3], 0
    %12 = vsyncpa [#allocation4], 0
    // Predicated region
    $region2: #{tpu_custom_call.1} parent=1 // pred_check
      _
    $region3: #{tpu_custom_call.1} parent=1 // pred_check_branch
      %14 = sbr.rel (0) target = $region5
    $region4: #{tpu_custom_call.1} parent=1 // pred_region
      _
    $region5: #{tpu_custom_call.1} parent=1 // pred_fallthru
      _
    // Predicated region
    $region6: #{tpu_custom_call.1} parent=1 // pred_check
      _
    $region7: #{tpu_custom_call.1} parent=1 // pred_check_branch
      %16 = sbr.rel (0) target = $region9
    $region8: #{tpu_custom_call.1} parent=1 // pred_region
      _
    $region9: #{tpu_custom_call.1} parent=1 // pred_fallthru
      _
    // Predicated region
    $region10: #{tpu_custom_call.1} parent=1 // pred_check
      _
    $region11: #{tpu_custom_call.1} parent=1 // pred_check_branch
      %18 = sbr.rel (0) target = $region13
    $region12: #{tpu_custom_call.1} parent=1 // pred_region
      _
    $region13: #{tpu_custom_call.1} parent=1 // pred_fallthru
      _
    // Predicated region
    $region14: #{tpu_custom_call.1} parent=1 // pred_check
      _
    $region15: #{tpu_custom_call.1} parent=1 // pred_check_branch
      %20 = sbr.rel (0) target = $region17
    $region16: #{tpu_custom_call.1} parent=1 // pred_region
      _
    $region17: #{tpu_custom_call.1} parent=1 // pred_fallthru
      _
    // Predicated region
    $region18: #{tpu_custom_call.1} parent=1 // pred_check
      _
    $region19: #{tpu_custom_call.1} parent=1 // pred_check_branch
      %22 = sbr.rel (0) target = $region21
    $region20: #{tpu_custom_call.1} parent=1 // pred_region
      %s24 = ssub.s32 1024, 1024
      %25 = vsyncadd [#allocation3], %s24
      %s26 = sshll.u32 [#allocation2], 4
      %s27 = int_to_ptr.vmem [resolvable:$true] %s26
      %32 = dma.hbm_to_vmem [thread:$0]  %s4, 1024, %s27, [#allocation3], 64, 64, 4
    $region21: #{tpu_custom_call.1} parent=1 // pred_fallthru
      _
    // Predicated region
    $region22: #{tpu_custom_call.1} parent=1 // pred_check
      _
    $region23: #{tpu_custom_call.1} parent=1 // pred_check_branch
      %34 = sbr.rel (0) target = $region25
    $region24: #{tpu_custom_call.1} parent=1 // pred_region
      _
    $region25: #{tpu_custom_call.1} parent=1 // pred_fallthru
      _
    // Predicated region
    $region26: #{tpu_custom_call.1} parent=1 // pred_check
      _
    $region27: #{tpu_custom_call.1} parent=1 // pred_check_branch
      %36 = sbr.rel (0) target = $region29
    $region28: #{tpu_custom_call.1} parent=1 // pred_region
      %37 = dma.done [#allocation3], 1024
    $region29: #{tpu_custom_call.1} parent=1 // pred_fallthru
      _
    %v39 = vld [vmem:[%s0] sm:$0xff]
    %v40 = vld [vmem:[%s0 + $0x8] sm:$0xff]
    %v41 = vld [vmem:[%s1] sm:$0x1]
    %43 = vset.pattern.permute.xlu0 0
    %44 = vperm.xlu0 %43, %v39
    %v45 = vpop.permute.xlu0 %44
    %48 = vset.pattern.permute.xlu0 0
    %49 = vperm.xlu0 %48, %v40
    %v50 = vpop.permute.xlu0 %49
    %v53 = vlaneseq
    %v54 = vshrl.u32 %v53, 7
    %v55 = vsub.s32 0, %v54
    %v56 = vrot.slane %v41, %v55
    %v58 = vmul.f32 %v45, %v56
    %v59 = vmul.f32 %v50, %v56
    %v60 = vand.u32 2147483647, %v58
    %vm61 = vcmp.le.f32.partialorder %v60, 0.7853982
    %vm62 = vcmp.lt.s32.totalorder %v58, 0
    %v63 = vand.u32 %v58, 2139095040
    %v64 = vshrl.u32 %v63, 23
    %v65 = vsub.s32 %v64, 127
    %v66 = vand.u32 2147483647, %v58
    %v67 = vand.u32 %v66, 8388607
    %v68 = vor.u32 %v67, 8388608
    %v69 = vsub.s32 0, %v68
    %v70 = vadd.s32 %v65, 1
    %vm71 = vcmp.gt.s32.totalorder %v70, 0
    %v72 = vsel %vm71, %v70, 0
    %v73 = vshrl.u32 %v72, 5
    %v74 = vand.u32 %v72, 31
    %v75 = vsub.s32 32, %v74
    %v76 = vshrl.u32 683565275, %v75
    %v77 = vshll.u32 683565275, %v74
    %v78 = vshrl.u32 2475754826, %v75
    %v79 = vor.u32 %v77, %v78
    %v80 = vshll.u32 2475754826, %v74
    %v81 = vshrl.u32 2131351028, %v75
    %v82 = vor.u32 %v80, %v81
    %v83 = vshll.u32 2131351028, %v74
    %v84 = vshrl.u32 2102212464, %v75
    %v85 = vor.u32 %v83, %v84
    %v86 = vshll.u32 2102212464, %v74
    %v87 = vshrl.u32 920167782, %v75
    %v88 = vor.u32 %v86, %v87
    %v89 = vshll.u32 920167782, %v74
    %v90 = vshrl.u32 1326507024, %v75
    %v91 = vor.u32 %v89, %v90
    %vm92 = vcmp.lt.s32.totalorder %v73, 1
    %vm93 = vcmp.lt.s32.totalorder %v73, 2
    %vm94 = vcmp.lt.s32.totalorder %v73, 3
    %vm95 = vcmp.lt.s32.totalorder %v73, 4
    %v96 = vsel %vm92, %v76, %v79
    %v97 = vsel %vm95, %v85, 2102212464
    %v98 = vsel %vm94, %v82, %v97
    %v99 = vsel %vm93, %v96, %v98
    %v100 = vsel %vm92, %v79, %v82
    %v101 = vsel %vm95, %v88, 920167782
    %v102 = vsel %vm94, %v85, %v101
    %v103 = vsel %vm93, %v100, %v102
    %v104 = vsel %vm92, %v82, %v85
    %v105 = vsel %vm95, %v91, 1326507024
    %v106 = vsel %vm94, %v88, %v105
    %v107 = vsel %vm93, %v104, %v106
    %v108 = vshll.u32 %v68, 8
    %v109 = vmul.u32.u64.compose %v108, %v107
    %v110 = vextract.low.u32 %v109
    %v111 = vextract.high.u32 %v109
    %v112 = vmul.u32.u64.compose %v108, %v103
    %v113 = vextract.low.u32 %v112
    %v114 = vextract.high.u32 %v112
    %v115 = vmul.u32 %v108, %v99
    %v116 = vadd.s32 %v111, %v113
    %vm117 = vc.u32 %v111, %v113
    %v118 = vadd.s32 %v114, 1
    %v119 = vsel %vm117, %v118, %v114
    %v120 = vadd.s32 %v115, %v119
    %v121 = vadd.s32 %v120, 536870912
    %v122 = vshrl.u32 %v121, 30
    %v123 = vshll.u32 %v122, 30
    %v124 = vsub.s32 %v120, %v123
    %vm125 = vcmp.lt.s32.totalorder %v124, 0
    %v126 = vsub.s32 0, %v124
    %v127 = vsel %vm125, %v126, %v124
    %v128 = vclz %v127
    %v129 = vsub.s32 %v128, 2
    %vm130 = vcmp.gt.s32.totalorder 0, %v129
    %v131 = vsel %vm130, 0, %v129
    %v132 = vsub.s32 32, %v131
    %v133 = vshll.u32 %v124, %v131
    %v134 = vshrl.u32 %v116, %v132
    %v135 = vor.u32 %v133, %v134
    %v136 = vsub.s32 4294967266, %v131
    %v137 = vadd.s32 %v136, 127
    %v138 = vshll.u32 %v137, 23
    %v139 = vor.u32 4788187, %v138
    %v140 = vand.u32 2147483647, %v139
    %v142 = vcvt.s32.f32 %v135
    %v143 = vmul.f32 %v142, %v140
    %v144 = vxor.u32 %v143, 2147483648
    %v145 = vsel %vm62, %v144, %v143
    %v146 = vsub.s32 4, %v122
    %v147 = vsel %vm62, %v146, %v122
    %v148 = vsel %vm61, %v58, %v145
    %v149 = vsel %vm61, 0, %v147
    %v150 = vcosq.f32.pop %v148
    %v151 = vsinq.f32.pop %v148
    %vm152 = vweird.f32 %v58
    %v153 = vadd.s32 %v149, 3
    %v154 = vand.u32 %v153, 3
    %vm155 = vcmp.lt.s32.totalorder %v154, 2
    %vm156 = vcmp.eq.s32.totalorder %v154, 0
    %v157 = vxor.u32 %v151, 2147483648
    %v158 = vsel %vm156, %v150, %v157
    %vm159 = vcmp.eq.s32.totalorder %v154, 2
    %v160 = vxor.u32 %v150, 2147483648
    %v161 = vsel %vm159, %v160, %v151
    %v162 = vsel %vm155, %v158, %v161
    %v163 = vsel %vm152, nan, %v162
    %v164 = vand.u32 2147483647, %v59
    %vm165 = vcmp.le.f32.partialorder %v164, 0.7853982
    %vm166 = vcmp.lt.s32.totalorder %v59, 0
    %v167 = vand.u32 %v59, 2139095040
    %v168 = vshrl.u32 %v167, 23
    %v169 = vsub.s32 %v168, 127
    %v170 = vand.u32 2147483647, %v59
    %v171 = vand.u32 %v170, 8388607
    %v172 = vor.u32 %v171, 8388608
    %v173 = vsub.s32 0, %v172
    %v174 = vadd.s32 %v169, 1
    %vm175 = vcmp.gt.s32.totalorder %v174, 0
    %v176 = vsel %vm175, %v174, 0
    %v177 = vshrl.u32 %v176, 5
    %v178 = vand.u32 %v176, 31
    %v179 = vsub.s32 32, %v178
    %v180 = vshrl.u32 683565275, %v179
    %v181 = vshll.u32 683565275, %v178
    %v182 = vshrl.u32 2475754826, %v179
    %v183 = vor.u32 %v181, %v182
    %v184 = vshll.u32 2475754826, %v178
    %v185 = vshrl.u32 2131351028, %v179
    %v186 = vor.u32 %v184, %v185
    %v187 = vshll.u32 2131351028, %v178
    %v188 = vshrl.u32 2102212464, %v179
    %v189 = vor.u32 %v187, %v188
    %v190 = vshll.u32 2102212464, %v178
    %v191 = vshrl.u32 920167782, %v179
    %v192 = vor.u32 %v190, %v191
    %v193 = vshll.u32 920167782, %v178
    %v194 = vshrl.u32 1326507024, %v179
    %v195 = vor.u32 %v193, %v194
    %vm196 = vcmp.lt.s32.totalorder %v177, 1
    %vm197 = vcmp.lt.s32.totalorder %v177, 2
    %vm198 = vcmp.lt.s32.totalorder %v177, 3
    %vm199 = vcmp.lt.s32.totalorder %v177, 4
    %v200 = vsel %vm196, %v180, %v183
    %v201 = vsel %vm199, %v189, 2102212464
    %v202 = vsel %vm198, %v186, %v201
    %v203 = vsel %vm197, %v200, %v202
    %v204 = vsel %vm196, %v183, %v186
    %v205 = vsel %vm199, %v192, 920167782
    %v206 = vsel %vm198, %v189, %v205
    %v207 = vsel %vm197, %v204, %v206
    %v208 = vsel %vm196, %v186, %v189
    %v209 = vsel %vm199, %v195, 1326507024
    %v210 = vsel %vm198, %v192, %v209
    %v211 = vsel %vm197, %v208, %v210
    %v212 = vshll.u32 %v172, 8
    %v213 = vmul.u32.u64.compose %v212, %v211
    %v214 = vextract.low.u32 %v213
    %v215 = vextract.high.u32 %v213
    %v216 = vmul.u32.u64.compose %v212, %v207
    %v217 = vextract.low.u32 %v216
    %v218 = vextract.high.u32 %v216
    %v219 = vmul.u32 %v212, %v203
    %v220 = vadd.s32 %v215, %v217
    %vm221 = vc.u32 %v215, %v217
    %v222 = vadd.s32 %v218, 1
    %v223 = vsel %vm221, %v222, %v218
    %v224 = vadd.s32 %v219, %v223
    %v225 = vadd.s32 %v224, 536870912
    %v226 = vshrl.u32 %v225, 30
    %v227 = vshll.u32 %v226, 30
    %v228 = vsub.s32 %v224, %v227
    %vm229 = vcmp.lt.s32.totalorder %v228, 0
    %v230 = vsub.s32 0, %v228
    %v231 = vsel %vm229, %v230, %v228
    %v232 = vclz %v231
    %v233 = vsub.s32 %v232, 2
    %vm234 = vcmp.gt.s32.totalorder 0, %v233
    %v235 = vsel %vm234, 0, %v233
    %v236 = vsub.s32 32, %v235
    %v237 = vshll.u32 %v228, %v235
    %v238 = vshrl.u32 %v220, %v236
    %v239 = vor.u32 %v237, %v238
    %v240 = vsub.s32 4294967266, %v235
    %v241 = vadd.s32 %v240, 127
    %v242 = vshll.u32 %v241, 23
    %v243 = vor.u32 4788187, %v242
    %v244 = vand.u32 2147483647, %v243
    %v246 = vcvt.s32.f32 %v239
    %v247 = vmul.f32 %v246, %v244
    %v248 = vxor.u32 %v247, 2147483648
    %v249 = vsel %vm166, %v248, %v247
    %v250 = vsub.s32 4, %v226
    %v251 = vsel %vm166, %v250, %v226
    %v252 = vsel %vm165, %v59, %v249
    %v253 = vsel %vm165, 0, %v251
    %v254 = vcosq.f32.pop %v252
    %v255 = vsinq.f32.pop %v252
    %vm256 = vweird.f32 %v59
    %v257 = vadd.s32 %v253, 3
    %v258 = vand.u32 %v257, 3
    %vm259 = vcmp.lt.s32.totalorder %v258, 2
    %vm260 = vcmp.eq.s32.totalorder %v258, 0
    %v261 = vxor.u32 %v255, 2147483648
    %v262 = vsel %vm260, %v254, %v261
    %vm263 = vcmp.eq.s32.totalorder %v258, 2
    %v264 = vxor.u32 %v254, 2147483648
    %v265 = vsel %vm263, %v264, %v255
    %v266 = vsel %vm259, %v262, %v265
    %v267 = vsel %vm256, nan, %v266
    %v268 = vpack.c.bf16 %v267, %v163
    %v269 = vld [vmem:[%s2] sm:$0xf]
    %v270 = vld [vmem:[%s2 + $0x4] sm:$0xf]
    %v271 = vand.u32 2147483647, %v58
    %vm272 = vcmp.le.f32.partialorder %v271, 0.7853982
    %vm273 = vcmp.lt.s32.totalorder %v58, 0
    %v274 = vand.u32 %v58, 2139095040
    %v275 = vshrl.u32 %v274, 23
    %v276 = vsub.s32 %v275, 127
    %v277 = vand.u32 2147483647, %v58
    %v278 = vand.u32 %v277, 8388607
    %v279 = vor.u32 %v278, 8388608
    %v280 = vsub.s32 0, %v279
    %v281 = vadd.s32 %v276, 1
    %vm282 = vcmp.gt.s32.totalorder %v281, 0
    %v283 = vsel %vm282, %v281, 0
    %v284 = vshrl.u32 %v283, 5
    %v285 = vand.u32 %v283, 31
    %v286 = vsub.s32 32, %v285
    %v287 = vshrl.u32 683565275, %v286
    %v288 = vshll.u32 683565275, %v285
    %v289 = vshrl.u32 2475754826, %v286
    %v290 = vor.u32 %v288, %v289
    %v291 = vshll.u32 2475754826, %v285
    %v292 = vshrl.u32 2131351028, %v286
    %v293 = vor.u32 %v291, %v292
    %v294 = vshll.u32 2131351028, %v285
    %v295 = vshrl.u32 2102212464, %v286
    %v296 = vor.u32 %v294, %v295
    %v297 = vshll.u32 2102212464, %v285
    %v298 = vshrl.u32 920167782, %v286
    %v299 = vor.u32 %v297, %v298
    %v300 = vshll.u32 920167782, %v285
    %v301 = vshrl.u32 1326507024, %v286
    %v302 = vor.u32 %v300, %v301
    %vm303 = vcmp.lt.s32.totalorder %v284, 1
    %vm304 = vcmp.lt.s32.totalorder %v284, 2
    %vm305 = vcmp.lt.s32.totalorder %v284, 3
    %vm306 = vcmp.lt.s32.totalorder %v284, 4
    %v307 = vsel %vm303, %v287, %v290
    %v308 = vsel %vm306, %v296, 2102212464
    %v309 = vsel %vm305, %v293, %v308
    %v310 = vsel %vm304, %v307, %v309
    %v311 = vsel %vm303, %v290, %v293
    %v312 = vsel %vm306, %v299, 920167782
    %v313 = vsel %vm305, %v296, %v312
    %v314 = vsel %vm304, %v311, %v313
    %v315 = vsel %vm303, %v293, %v296
    %v316 = vsel %vm306, %v302, 1326507024
    %v317 = vsel %vm305, %v299, %v316
    %v318 = vsel %vm304, %v315, %v317
    %v319 = vshll.u32 %v279, 8
    %v320 = vmul.u32.u64.compose %v319, %v318
    %v321 = vextract.low.u32 %v320
    %v322 = vextract.high.u32 %v320
    %v323 = vmul.u32.u64.compose %v319, %v314
    %v324 = vextract.low.u32 %v323
    %v325 = vextract.high.u32 %v323
    %v326 = vmul.u32 %v319, %v310
    %v327 = vadd.s32 %v322, %v324
    %vm328 = vc.u32 %v322, %v324
    %v329 = vadd.s32 %v325, 1
    %v330 = vsel %vm328, %v329, %v325
    %v331 = vadd.s32 %v326, %v330
    %v332 = vadd.s32 %v331, 536870912
    %v333 = vshrl.u32 %v332, 30
    %v334 = vshll.u32 %v333, 30
    %v335 = vsub.s32 %v331, %v334
    %vm336 = vcmp.lt.s32.totalorder %v335, 0
    %v337 = vsub.s32 0, %v335
    %v338 = vsel %vm336, %v337, %v335
    %v339 = vclz %v338
    %v340 = vsub.s32 %v339, 2
    %vm341 = vcmp.gt.s32.totalorder 0, %v340
    %v342 = vsel %vm341, 0, %v340
    %v343 = vsub.s32 32, %v342
    %v344 = vshll.u32 %v335, %v342
    %v345 = vshrl.u32 %v327, %v343
    %v346 = vor.u32 %v344, %v345
    %v347 = vsub.s32 4294967266, %v342
    %v348 = vadd.s32 %v347, 127
    %v349 = vshll.u32 %v348, 23
    %v350 = vor.u32 4788187, %v349
    %v351 = vand.u32 2147483647, %v350
    %v353 = vcvt.s32.f32 %v346
    %v354 = vmul.f32 %v353, %v351
    %v355 = vxor.u32 %v354, 2147483648
    %v356 = vsel %vm273, %v355, %v354
    %v357 = vsub.s32 4, %v333
    %v358 = vsel %vm273, %v357, %v333
    %v359 = vsel %vm272, %v58, %v356
    %v360 = vsel %vm272, 0, %v358
    %v361 = vcosq.f32.pop %v359
    %v362 = vsinq.f32.pop %v359
    %vm363 = vweird.f32 %v58
    %v364 = vand.u32 %v360, 3
    %vm365 = vcmp.lt.s32.totalorder %v364, 2
    %vm366 = vcmp.eq.s32.totalorder %v364, 0
    %v367 = vxor.u32 %v362, 2147483648
    %v368 = vsel %vm366, %v361, %v367
    %vm369 = vcmp.eq.s32.totalorder %v364, 2
    %v370 = vxor.u32 %v361, 2147483648
    %v371 = vsel %vm369, %v370, %v362
    %v372 = vsel %vm365, %v368, %v371
    %v373 = vsel %vm363, nan, %v372
    %v374 = vand.u32 2147483647, %v59
    %vm375 = vcmp.le.f32.partialorder %v374, 0.7853982
    %vm376 = vcmp.lt.s32.totalorder %v59, 0
    %v377 = vand.u32 %v59, 2139095040
    %v378 = vshrl.u32 %v377, 23
    %v379 = vsub.s32 %v378, 127
    %v380 = vand.u32 2147483647, %v59
    %v381 = vand.u32 %v380, 8388607
    %v382 = vor.u32 %v381, 8388608
    %v383 = vsub.s32 0, %v382
    %v384 = vadd.s32 %v379, 1
    %vm385 = vcmp.gt.s32.totalorder %v384, 0
    %v386 = vsel %vm385, %v384, 0
    %v387 = vshrl.u32 %v386, 5
    %v388 = vand.u32 %v386, 31
    %v389 = vsub.s32 32, %v388
    %v390 = vshrl.u32 683565275, %v389
    %v391 = vshll.u32 683565275, %v388
    %v392 = vshrl.u32 2475754826, %v389
    %v393 = vor.u32 %v391, %v392
    %v394 = vshll.u32 2475754826, %v388
    %v395 = vshrl.u32 2131351028, %v389
    %v396 = vor.u32 %v394, %v395
    %v397 = vshll.u32 2131351028, %v388
    %v398 = vshrl.u32 2102212464, %v389
    %v399 = vor.u32 %v397, %v398
    %v400 = vshll.u32 2102212464, %v388
    %v401 = vshrl.u32 920167782, %v389
    %v402 = vor.u32 %v400, %v401
    %v403 = vshll.u32 920167782, %v388
    %v404 = vshrl.u32 1326507024, %v389
    %v405 = vor.u32 %v403, %v404
    %vm406 = vcmp.lt.s32.totalorder %v387, 1
    %vm407 = vcmp.lt.s32.totalorder %v387, 2
    %vm408 = vcmp.lt.s32.totalorder %v387, 3
    %vm409 = vcmp.lt.s32.totalorder %v387, 4
    %v410 = vsel %vm406, %v390, %v393
    %v411 = vsel %vm409, %v399, 2102212464
    %v412 = vsel %vm408, %v396, %v411
    %v413 = vsel %vm407, %v410, %v412
    %v414 = vsel %vm406, %v393, %v396
    %v415 = vsel %vm409, %v402, 920167782
    %v416 = vsel %vm408, %v399, %v415
    %v417 = vsel %vm407, %v414, %v416
    %v418 = vsel %vm406, %v396, %v399
    %v419 = vsel %vm409, %v405, 1326507024
    %v420 = vsel %vm408, %v402, %v419
    %v421 = vsel %vm407, %v418, %v420
    %v422 = vshll.u32 %v382, 8
    %v423 = vmul.u32.u64.compose %v422, %v421
    %v424 = vextract.low.u32 %v423
    %v425 = vextract.high.u32 %v423
    %v426 = vmul.u32.u64.compose %v422, %v417
    %v427 = vextract.low.u32 %v426
    %v428 = vextract.high.u32 %v426
    %v429 = vmul.u32 %v422, %v413
    %v430 = vadd.s32 %v425, %v427
    %vm431 = vc.u32 %v425, %v427
    %v432 = vadd.s32 %v428, 1
    %v433 = vsel %vm431, %v432, %v428
    %v434 = vadd.s32 %v429, %v433
    %v435 = vadd.s32 %v434, 536870912
    %v436 = vshrl.u32 %v435, 30
    %v437 = vshll.u32 %v436, 30
    %v438 = vsub.s32 %v434, %v437
    %vm439 = vcmp.lt.s32.totalorder %v438, 0
    %v440 = vsub.s32 0, %v438
    %v441 = vsel %vm439, %v440, %v438
    %v442 = vclz %v441
    %v443 = vsub.s32 %v442, 2
    %vm444 = vcmp.gt.s32.totalorder 0, %v443
    %v445 = vsel %vm444, 0, %v443
    %v446 = vsub.s32 32, %v445
    %v447 = vshll.u32 %v438, %v445
    %v448 = vshrl.u32 %v430, %v446
    %v449 = vor.u32 %v447, %v448
    %v450 = vsub.s32 4294967266, %v445
    %v451 = vadd.s32 %v450, 127
    %v452 = vshll.u32 %v451, 23
    %v453 = vor.u32 4788187, %v452
    %v454 = vand.u32 2147483647, %v453
    %v456 = vcvt.s32.f32 %v449
    %v457 = vmul.f32 %v456, %v454
    %v458 = vxor.u32 %v457, 2147483648
    %v459 = vsel %vm376, %v458, %v457
    %v460 = vsub.s32 4, %v436
    %v461 = vsel %vm376, %v460, %v436
    %v462 = vsel %vm375, %v59, %v459
    %v463 = vsel %vm375, 0, %v461
    %v464 = vcosq.f32.pop %v462
    %v465 = vsinq.f32.pop %v462
    %vm466 = vweird.f32 %v59
    %v467 = vand.u32 %v463, 3
    %vm468 = vcmp.lt.s32.totalorder %v467, 2
    %vm469 = vcmp.eq.s32.totalorder %v467, 0
    %v470 = vxor.u32 %v465, 2147483648
    %v471 = vsel %vm469, %v464, %v470
    %vm472 = vcmp.eq.s32.totalorder %v467, 2
    %v473 = vxor.u32 %v464, 2147483648
    %v474 = vsel %vm472, %v473, %v465
    %v475 = vsel %vm468, %v471, %v474
    %v476 = vsel %vm466, nan, %v475
    %v477 = vpack.c.bf16 %v476, %v373
    %v478 = vld [vmem:[%s2 + $0x8] sm:$0xf]
    %v479 = vld [vmem:[%s2 + $0xc] sm:$0xf]
    %v482 = vunpack.c.l.b16 %v478
    %v483 = vunpack.c.l.b16 %v479
    %v484 = vpack.c.b16 %v483, %v482
    %vm486 = vcmask 130048
    %v488 = vsel %vm486, %v477, 0
    %490 = vmatprep.subr.bf16.mxu0 0
    %491 = vmatpush1.bf16.msra.mxu0 %v484
    %492 = vmatprep.subr.bf16.mxu0 0
    %493 = vmatpush1.bf16.msra.mxu0 0
    %494 = vmatprep.subr.bf16.mxu0 0
    %495 = vmatpush1.bf16.msra.mxu0 0
    %496 = vmatprep.subr.bf16.mxu0 0
    %497 = vmatpush1.bf16.msra.mxu0 0
    %498 = vmatprep.subr.bf16.mxu0 0
    %499 = vmatpush1.bf16.msra.mxu0 0
    %500 = vmatprep.subr.bf16.mxu0 0
    %501 = vmatpush1.bf16.msra.mxu0 0
    %502 = vmatprep.subr.bf16.mxu0 0
    %503 = vmatpush1.bf16.msra.mxu0 0
    %504 = vmatprep.subr.bf16.mxu0 0
    %505 = vmatpush1.bf16.msra.mxu0 0
    %506 = vmatprep.subr.bf16.mxu0 0
    %507 = vmatpush1.bf16.msra.mxu0 0
    %508 = vmatprep.subr.bf16.mxu0 0
    %509 = vmatpush1.bf16.msra.mxu0 0
    %510 = vmatprep.subr.bf16.mxu0 0
    %511 = vmatpush1.bf16.msra.mxu0 0
    %512 = vmatprep.subr.bf16.mxu0 0
    %513 = vmatpush1.bf16.msra.mxu0 0
    %514 = vmatprep.subr.bf16.mxu0 0
    %515 = vmatpush1.bf16.msra.mxu0 0
    %516 = vmatprep.subr.bf16.mxu0 0
    %517 = vmatpush1.bf16.msra.mxu0 0
    %518 = vmatprep.subr.bf16.mxu0 0
    %519 = vmatpush1.bf16.msra.mxu0 0
    %520 = vmatprep.subr.bf16.mxu0 0
    %521 = vmatpush1.bf16.msra.mxu0 0
    %522 = vmatprep.mubr.bf16.mxu0 0
    %523 = vmatmul.mubr.bf16.gmra.mrb[0].mxu0 %v488
    %v524 = vpop.f32.mrb[0].mxu0
    %v525 = vadd.f32 0.0, %v524
    %v526 = vpop.f32.mrb[0].mxu0
    %v527 = vpop.f32.mrb[0].mxu0
    %v528 = vadd.f32 0.0, %v527
    %v529 = vpop.f32.mrb[0].mxu0
    %530 = vdwg.mxu0
    %v533 = vunpack.c.l.b16 %v269
    %v534 = vunpack.c.l.b16 %v270
    %v535 = vpack.c.b16 %v534, %v533
    %v538 = vsel %vm486, %v268, 0
    %540 = vmatprep.subr.bf16.mxu0 0
    %541 = vmatpush1.bf16.msra.mxu0 %v535
    %542 = vmatprep.subr.bf16.mxu0 0
    %543 = vmatpush1.bf16.msra.mxu0 0
    %544 = vmatprep.subr.bf16.mxu0 0
    %545 = vmatpush1.bf16.msra.mxu0 0
    %546 = vmatprep.subr.bf16.mxu0 0
    %547 = vmatpush1.bf16.msra.mxu0 0
    %548 = vmatprep.subr.bf16.mxu0 0
    %549 = vmatpush1.bf16.msra.mxu0 0
    %550 = vmatprep.subr.bf16.mxu0 0
    %551 = vmatpush1.bf16.msra.mxu0 0
    %552 = vmatprep.subr.bf16.mxu0 0
    %553 = vmatpush1.bf16.msra.mxu0 0
    %554 = vmatprep.subr.bf16.mxu0 0
    %555 = vmatpush1.bf16.msra.mxu0 0
    %556 = vmatprep.subr.bf16.mxu0 0
    %557 = vmatpush1.bf16.msra.mxu0 0
    %558 = vmatprep.subr.bf16.mxu0 0
    %559 = vmatpush1.bf16.msra.mxu0 0
    %560 = vmatprep.subr.bf16.mxu0 0
    %561 = vmatpush1.bf16.msra.mxu0 0
    %562 = vmatprep.subr.bf16.mxu0 0
    %563 = vmatpush1.bf16.msra.mxu0 0
    %564 = vmatprep.subr.bf16.mxu0 0
    %565 = vmatpush1.bf16.msra.mxu0 0
    %566 = vmatprep.subr.bf16.mxu0 0
    %567 = vmatpush1.bf16.msra.mxu0 0
    %568 = vmatprep.subr.bf16.mxu0 0
    %569 = vmatpush1.bf16.msra.mxu0 0
    %570 = vmatprep.subr.bf16.mxu0 0
    %571 = vmatpush1.bf16.msra.mxu0 0
    %572 = vmatprep.mubr.bf16.mxu0 0
    %573 = vmatmul.mubr.bf16.gmra.mrb[0].mxu0 %v538
    %v574 = vpop.f32.mrb[0].mxu0
    %v575 = vadd.f32 %v525, %v574
    %v576 = vpop.f32.mrb[0].mxu0
    %v577 = vpop.f32.mrb[0].mxu0
    %v578 = vadd.f32 %v528, %v577
    %v579 = vpop.f32.mrb[0].mxu0
    %580 = vdwg.mxu0
    %v581 = vld [vmem:[%s3] sm:$0x1]
    %v583 = vlaneseq
    %v584 = vshrl.u32 %v583, 7
    %v585 = vsub.s32 0, %v584
    %v586 = vrot.slane %v581, %v585
    %v588 = vadd.f32 %v575, %v586
    %v589 = vadd.f32 %v578, %v586
    %v590 = vxor.u32 %v588, 2147483648
    %v591 = vxor.u32 %v589, 2147483648
    %v592 = vmul.f32 %v590, 1.442695
    %v593 = vpow.pop %v592
    %v594 = vmul.f32 %v591, 1.442695
    %v595 = vpow.pop %v594
    %v596 = vadd.f32 %v593, 1.0
    %v597 = vadd.f32 %v595, 1.0
    %v598 = vrcp.pop %v596
    %v599 = vmul.f32 1.0, %v598
    %v600 = vrcp.pop %v597
    %v601 = vmul.f32 1.0, %v600
    %v602 = vmul.f32 %v588, %v599
    %v603 = vmul.f32 %v589, %v601
    %v604 = vpack.c.bf16 %v603, %v602
    %v605 = vld [vmem:[#allocation2] sm:$0xf]
    %v606 = vld [vmem:[#allocation2 + $0x4] sm:$0xf]
    %v607 = vld [vmem:[#allocation2 + $0x8] sm:$0xf]
    %v608 = vld [vmem:[#allocation2 + $0xc] sm:$0xf]
    %v609 = vld [vmem:[#allocation2 + $0x10] sm:$0xf]
    %v610 = vld [vmem:[#allocation2 + $0x14] sm:$0xf]
    %v611 = vld [vmem:[#allocation2 + $0x18] sm:$0xf]
    %v612 = vld [vmem:[#allocation2 + $0x1c] sm:$0xf]
    %v613 = vld [vmem:[#allocation2 + $0x20] sm:$0xf]
    %v614 = vld [vmem:[#allocation2 + $0x24] sm:$0xf]
    %v615 = vld [vmem:[#allocation2 + $0x28] sm:$0xf]
    %v616 = vld [vmem:[#allocation2 + $0x2c] sm:$0xf]
    %v617 = vld [vmem:[#allocation2 + $0x30] sm:$0xf]
    %v618 = vld [vmem:[#allocation2 + $0x34] sm:$0xf]
    %v619 = vld [vmem:[#allocation2 + $0x38] sm:$0xf]
    %v620 = vld [vmem:[#allocation2 + $0x3c] sm:$0xf]
    %v621 = vld [vmem:[%s5] sm:$0x1]
    %v623 = vlaneseq
    %v624 = vshrl.u32 %v623, 7
    %v625 = vsub.s32 0, %v624
    %v626 = vrot.slane %v621, %v625
    %v644 = vunpack.c.l.b16 %v605
    %v645 = vunpack.c.l.b16 %v606
    %v646 = vunpack.c.l.b16 %v607
    %v647 = vunpack.c.l.b16 %v608
    %v648 = vunpack.c.l.b16 %v609
    %v649 = vunpack.c.l.b16 %v610
    %v650 = vunpack.c.l.b16 %v611
    %v651 = vunpack.c.l.b16 %v612
    %v652 = vunpack.c.l.b16 %v613
    %v653 = vunpack.c.l.b16 %v614
    %v654 = vunpack.c.l.b16 %v615
    %v655 = vunpack.c.l.b16 %v616
    %v656 = vunpack.c.l.b16 %v617
    %v657 = vunpack.c.l.b16 %v618
    %v658 = vunpack.c.l.b16 %v619
    %v659 = vunpack.c.l.b16 %v620
    %v660 = vpack.c.b16 %v645, %v644
    %v661 = vpack.c.b16 %v647, %v646
    %v662 = vpack.c.b16 %v649, %v648
    %v663 = vpack.c.b16 %v651, %v650
    %v664 = vpack.c.b16 %v653, %v652
    %v665 = vpack.c.b16 %v655, %v654
    %v666 = vpack.c.b16 %v657, %v656
    %v667 = vpack.c.b16 %v659, %v658
    %676 = vmatprep.subr.bf16.mxu0 0
    %677 = vmatpush1.bf16.msra.mxu0 %v660
    %678 = vmatprep.subr.bf16.mxu0 0
    %679 = vmatpush1.bf16.msra.mxu0 %v661
    %680 = vmatprep.subr.bf16.mxu0 0
    %681 = vmatpush1.bf16.msra.mxu0 %v662
    %682 = vmatprep.subr.bf16.mxu0 0
    %683 = vmatpush1.bf16.msra.mxu0 %v663
    %684 = vmatprep.subr.bf16.mxu0 0
    %685 = vmatpush1.bf16.msra.mxu0 %v664
    %686 = vmatprep.subr.bf16.mxu0 0
    %687 = vmatpush1.bf16.msra.mxu0 %v665
    %688 = vmatprep.subr.bf16.mxu0 0
    %689 = vmatpush1.bf16.msra.mxu0 %v666
    %690 = vmatprep.subr.bf16.mxu0 0
    %691 = vmatpush1.bf16.msra.mxu0 %v667
    %692 = vmatprep.subr.bf16.mxu0 0
    %693 = vmatpush1.bf16.msra.mxu0 0
    %694 = vmatprep.subr.bf16.mxu0 0
    %695 = vmatpush1.bf16.msra.mxu0 0
    %696 = vmatprep.subr.bf16.mxu0 0
    %697 = vmatpush1.bf16.msra.mxu0 0
    %698 = vmatprep.subr.bf16.mxu0 0
    %699 = vmatpush1.bf16.msra.mxu0 0
    %700 = vmatprep.subr.bf16.mxu0 0
    %701 = vmatpush1.bf16.msra.mxu0 0
    %702 = vmatprep.subr.bf16.mxu0 0
    %703 = vmatpush1.bf16.msra.mxu0 0
    %704 = vmatprep.subr.bf16.mxu0 0
    %705 = vmatpush1.bf16.msra.mxu0 0
    %706 = vmatprep.subr.bf16.mxu0 0
    %707 = vmatpush1.bf16.msra.mxu0 0
    %708 = vmatprep.mubr.bf16.mxu0 0
    %709 = vmatmul.mubr.bf16.gmra.mrb[0].mxu0 %v604
    %v710 = vpop.f32.mrb[0].mxu0
    %v711 = vadd.f32 %v626, %v710
    %v712 = vpop.f32.mrb[0].mxu0
    %v713 = vpop.f32.mrb[0].mxu0
    %v714 = vadd.f32 %v626, %v713
    %v715 = vpop.f32.mrb[0].mxu0
    %716 = vdwg.mxu0
    %717 = vst [vmem:[#allocation5] sm:$0xff] %v711
    %718 = vst [vmem:[#allocation5 + $0x8] sm:$0xff] %v714
    // Predicated region
    $region30: #{tpu_custom_call.1} parent=1 // pred_check
      _
    $region31: #{tpu_custom_call.1} parent=1 // pred_check_branch
      %720 = sbr.rel (0) target = $region33
    $region32: #{tpu_custom_call.1} parent=1 // pred_region
      %s722 = ssub.s32 256, 256
      %723 = vsyncadd [#allocation4], %s722
      %s724 = sshll.u32 [#allocation5], 4
      %s725 = int_to_ptr.vmem [resolvable:$true] %s724
      %730 = dma.vmem_to_hbm [thread:$0]  %s725, 256, %s6, [#allocation4], 128, 128, 8
    $region33: #{tpu_custom_call.1} parent=1 // pred_fallthru
      _
    // Predicated region
    $region34: #{tpu_custom_call.1} parent=1 // pred_check
      _
    $region35: #{tpu_custom_call.1} parent=1 // pred_check_branch
      %732 = sbr.rel (0) target = $region37
    $region36: #{tpu_custom_call.1} parent=1 // pred_region
      %733 = dma.done [#allocation4], 256
    $region37: #{tpu_custom_call.1} parent=1 // pred_fallthru
      _
    %734 = vsyncpa [#allocation3], 1
    %735 = vsyncpa [#allocation4], 1

</llo_original>
